<compile_context>
chip_gen: v7x
topology: tpu7x:2x2x1
jax: 0.10.0
libtpu: 0.0.40
codegen_flags: <defaults>
</compile_context>

<pallas_src>
import functools

import jax
import jax.numpy as jnp
from jax import lax
from jax.experimental import pallas as pl
from jax.experimental.pallas import tpu as pltpu


def _round_up(x, m):
    return (x + m - 1) // m * m


def _choose_tiling(n, row_tile):
    """128-aligned row tile; keep the parallel grid even for v7x's 2 TensorCores."""
    grid = max(1, -(-n // max(1, row_tile)))
    if grid > 1 and grid % 2:
        grid += 1
    tn = min(_round_up(-(-n // grid), 128), _round_up(n, 128))
    grid = -(-n // tn)
    if grid > 1 and grid % 2:
        grid += 1                      # one extra fully-masked tile; waste <= tn/n
    return tn, grid, grid * tn


def vq_kernel(zt_ref, w_ref, b_ref, em2_ref, e2_ref, ehi_ref, elo_ref,
              qt_ref, idx_ref, cnt_ref, sq_ref, *, n_valid):
    tn = zt_ref.shape[1]
    k = em2_ref.shape[0]

    # ---- pre_vq_conv (nn.Linear) + sigmoid, transposed orientation (D, TN) ----
    zt = zt_ref[...].astype(jnp.bfloat16)                       # (D, TN) bf16
    pre = jnp.dot(w_ref[...], zt,
                  preferred_element_type=jnp.float32)           # (D, TN) f32
    x = jax.nn.sigmoid(pre + b_ref[...])                        # (D, TN) f32
    xb = x.astype(jnp.bfloat16)

    # ---- distance surrogate ||e_k||^2 - 2 e_k.x (||x||^2 dropped: row-constant) ----
    # em2 is the pre-scaled bf16 codebook (-2*E), so no per-tile scaling is needed.
    cross = jnp.dot(em2_ref[...], xb,
                    preferred_element_type=jnp.float32)          # (K, TN) f32
    score = e2_ref[...] + cross                                  # (K, TN)

    # ---- argmin over codebook (sublane) axis; first-minimum tie-break ----
    iota = lax.broadcasted_iota(jnp.int32, score.shape, 0).astype(jnp.float32)
    min_s = jnp.min(score, axis=0, keepdims=True)                # (1, TN)
    idx_f = jnp.min(jnp.where(score <= min_s, iota, float(k)),
                    axis=0, keepdims=True)                       # (1, TN) f32
    idx_ref[...] = idx_f.astype(jnp.int32)                       # lane-dense indices

    # ---- one-hot (transposed) and quantized rows via hi/lo bf16 codebook gather ----
    hit = (iota == idx_f)                                        # (K, TN) bool
    enc_bf = hit.astype(jnp.bfloat16)
    quant = (jnp.dot(ehi_ref[...], enc_bf, preferred_element_type=jnp.float32)
             + jnp.dot(elo_ref[...], enc_bf, preferred_element_type=jnp.float32))
    qt_ref[...] = quant                                          # (D, TN) f32, exact-ish rows

    # ---- per-tile partial reductions, masking padded columns ----
    col0 = pl.program_id(0) * tn
    cols = col0 + lax.broadcasted_iota(jnp.int32, (1, tn), 1)
    validf = (cols < n_valid).astype(jnp.float32)                # (1, TN)

    cnt = jnp.sum(jnp.where(hit, validf, 0.0), axis=1, keepdims=True)   # (K, 1)
    cnt_ref[...] = cnt.reshape(1, k, 1)

    d = quant - x
    colsum = jnp.sum(d * d, axis=0, keepdims=True) * validf             # (1, TN)
    sq_ref[...] = jnp.sum(colsum, axis=1, keepdims=True).reshape(1, 1, 1)


def model_vq_forward(z, w, b, embedding, *, commitment_cost, row_tile=2048,
                     return_encodings=False):
    """z: (B, T, Din) encoder output; w,b: pre_vq Linear; embedding: (K, D)."""
    B, T, Din = z.shape
    N = B * T
    Dout = w.shape[0]
    K, D = embedding.shape
    assert Dout == D == Din

    tn, grid, n_pad = _choose_tiling(N, row_tile)

    # Transposed, lane-dense layout: row index lives on the 128-lane axis.
    zt = z.reshape(N, Din).T                                     # (Din, N)
    if n_pad != N:
        zt = jnp.pad(zt, ((0, 0), (0, n_pad - N)))

    # Hoisted resident operands (cast / transposed / pre-scaled once).
    w_bf = w.astype(jnp.bfloat16)                                # (Dout, Din) bf16
    b_col = b.reshape(Dout, 1).astype(jnp.float32)               # (Dout, 1)
    em2_bf = (-2.0 * embedding).astype(jnp.bfloat16)             # (K, D) bf16, pre-scaled
    e2_col = jnp.sum(embedding * embedding, axis=1, keepdims=True)   # (K, 1) f32
    e_t = embedding.T.astype(jnp.float32)                        # (D, K)
    e_hi = e_t.astype(jnp.bfloat16)
    e_lo = (e_t - e_hi.astype(jnp.float32)).astype(jnp.bfloat16)

    kernel = functools.partial(vq_kernel, n_valid=N)

    qt, idx, cnt, sq = pl.pallas_call(
        kernel,
        out_shape=(
            jax.ShapeDtypeStruct((D, n_pad), jnp.float32),   # quantized (transposed, padded)
            jax.ShapeDtypeStruct((1, n_pad), jnp.int32),     # code indices (lane-dense)
            jax.ShapeDtypeStruct((grid, K, 1), jnp.float32), # per-tile code counts
            jax.ShapeDtypeStruct((grid, 1, 1), jnp.float32), # per-tile sum ||q - x||^2
        ),
        grid=(grid,),
        in_specs=[
            pl.BlockSpec((Din, tn), lambda i: (0, i)),       # z tile (transposed)
            pl.BlockSpec((Dout, Din), lambda i: (0, 0)),     # resident W (bf16)
            pl.BlockSpec((Dout, 1), lambda i: (0, 0)),       # resident bias column
            pl.BlockSpec((K, D), lambda i: (0, 0)),          # resident -2*E (bf16)
            pl.BlockSpec((K, 1), lambda i: (0, 0)),          # resident ||e||^2 column
            pl.BlockSpec((D, K), lambda i: (0, 0)),          # resident E^T hi (bf16)
            pl.BlockSpec((D, K), lambda i: (0, 0)),          # resident E^T lo (bf16)
        ],
        out_specs=(
            pl.BlockSpec((D, tn), lambda i: (0, i)),
            pl.BlockSpec((1, tn), lambda i: (0, i)),
            pl.BlockSpec((1, K, 1), lambda i: (i, 0, 0)),
            pl.BlockSpec((1, 1, 1), lambda i: (i, 0, 0)),
        ),
        compiler_params=pltpu.CompilerParams(
            dimension_semantics=("parallel",),       # shard row tiles across TCs (v7x)
            vmem_limit_bytes=48 * 1024 * 1024,       # safe on v5e/v6e/v7x for tn<=4096
        ),
    )(zt, w_bf, b_col, em2_bf, e2_col, e_hi, e_lo)

    # Finish the (nonlinear) reductions from per-tile partials in the wrapper.
    counts = jnp.sum(cnt, axis=0)[:, 0]                          # (K,)
    avg_probs = counts / N
    perplexity = jnp.exp(-jnp.sum(avg_probs * jnp.log(avg_probs + 1e-10)))
    loss = commitment_cost * jnp.sum(sq) / (N * D)

    quantized = qt[:, :N].T.reshape(B, T, D)                     # layout plumbing only
    indices = idx[0, :N]
    # Only materialize the (N, K) one-hot if explicitly requested (Model discards it).
    encodings = (jax.nn.one_hot(indices, K, dtype=jnp.float32)
                 if return_encodings else None)
    return loss, quantized, perplexity, encodings


def reference_forward(z, w, b, embedding, *, commitment_cost):
    """Pure-JAX reference mirroring the PyTorch semantics.

    The pre-VQ linear and the distance cross-term use the same bf16 MXU-boundary
    rounding as the kernel so code selection (argmin) is compared apples-to-apples;
    pure-f32 torch differs only on near-degenerate ties.
    """
    B, T, Din = z.shape
    K, D = embedding.shape
    zf = z.reshape(-1, Din)
    pre = jnp.dot(zf.astype(jnp.bfloat16), w.astype(jnp.bfloat16).T,
                  preferred_element_type=jnp.float32) + b
    x = jax.nn.sigmoid(pre)
    cross = jnp.dot(x.astype(jnp.bfloat16),
                    (-2.0 * embedding).astype(jnp.bfloat16).T,
                    preferred_element_type=jnp.float32)
    dist = (jnp.sum(x ** 2, axis=1, keepdims=True)
            + jnp.sum(embedding ** 2, axis=1)
            + cross)
    idx = jnp.argmin(dist, axis=1)
    enc = jax.nn.one_hot(idx, K, dtype=jnp.float32)
    quant = enc @ embedding
    loss = commitment_cost * jnp.mean((quant - x) ** 2)
    p = jnp.mean(enc, axis=0)
    perp = jnp.exp(-jnp.sum(p * jnp.log(p + 1e-10)))
    return loss, quant.reshape(B, T, D), perp, enc


def _check(out, ref, n_rows, q_shape, k, expect_enc):
    loss, quant, perp, enc = out
    rloss, rquant, rperp, _ = ref
    assert quant.shape == q_shape, (quant.shape, q_shape)
    if expect_enc:
        assert enc is not None and enc.shape == (n_rows, k), enc
    else:
        assert enc is None
    qf = quant.reshape(n_rows, -1)
    rf = rquant.reshape(n_rows, -1)
    # Row-wise match on quantized latents; allow a vanishing fraction of rows to
    # pick a different (near-tied) code due to floating-point summation order.
    row_ok = jnp.all(jnp.abs(qf - rf) <= 1e-3 + 1e-3 * jnp.abs(rf), axis=-1)
    n_bad = n_rows - int(jnp.sum(row_ok))
    assert n_bad <= max(1, n_rows // 500), f"mismatched rows: {n_bad}/{n_rows}"
    assert jnp.allclose(loss, rloss, rtol=2e-2, atol=1e-4), (float(loss), float(rloss))
    assert jnp.allclose(perp, rperp, rtol=2e-2, atol=1e-3), (float(perp), float(rperp))


if __name__ == "__main__":
    # Model hyper-params (small): num_hiddens=8 -> pre_vq Linear(32, 32),
    # embedding_dim=32, num_embeddings=128, commitment_cost=0.25.
    num_hiddens = 8
    embedding_dim = num_hiddens * 4          # 32
    num_embeddings = 128
    commitment_cost = 0.25

    key = jax.random.PRNGKey(0)
    kz, kw, kb, ke, kz2 = jax.random.split(key, 5)
    w = jax.random.normal(kw, (embedding_dim, embedding_dim), dtype=jnp.float32) * 0.1
    b = jax.random.normal(kb, (embedding_dim,), dtype=jnp.float32) * 0.1
    embedding = jax.random.normal(ke, (num_embeddings, embedding_dim), dtype=jnp.float32)

    # Case 1: small module-consistent shapes (single tile; semantic verification only —
    # at N=16 the kernel is pure launch/DMA overhead).
    B, T = 2, 8
    z = jax.random.normal(kz, (B, T, embedding_dim), dtype=jnp.float32)
    out = jax.block_until_ready(
        model_vq_forward(z, w, b, embedding, commitment_cost=commitment_cost,
                         return_encodings=True))
    ref = reference_forward(z, w, b, embedding, commitment_cost=commitment_cost)
    _check(out, ref, B * T, (B, T, embedding_dim), num_embeddings, expect_enc=True)

    # Case 2: multi-tile (even) grid with a ragged final tile — exercises padding,
    # masking, lane-dense transposed outputs, and the resident bf16 codebook.
    B2, T2 = 3, 1000
    z2 = jax.random.normal(kz2, (B2, T2, embedding_dim), dtype=jnp.float32)
    out2 = jax.block_until_ready(
        model_vq_forward(z2, w, b, embedding, commitment_cost=commitment_cost))
    ref2 = reference_forward(z2, w, b, embedding, commitment_cost=commitment_cost)
    _check(out2, ref2, B2 * T2, (B2, T2, embedding_dim), num_embeddings, expect_enc=False)

    print("KERNEL_OK")
</pallas_src>

<mosaic_0001>
module attributes {stable_mosaic.version = 11 : i64} {
  func.func @vq_kernel(%arg0: i32, %arg1: memref<32x128xf32, #tpu.memory_space<vmem>>, %arg2: memref<32x32xbf16, #tpu.memory_space<vmem>>, %arg3: memref<32x1xf32, #tpu.memory_space<vmem>>, %arg4: memref<128x32xbf16, #tpu.memory_space<vmem>>, %arg5: memref<128x1xf32, #tpu.memory_space<vmem>>, %arg6: memref<32x128xbf16, #tpu.memory_space<vmem>>, %arg7: memref<32x128xbf16, #tpu.memory_space<vmem>>, %arg8: memref<32x128xf32, #tpu.memory_space<vmem>>, %arg9: memref<1x128xi32, #tpu.memory_space<vmem>>, %arg10: memref<1x128x1xf32, #tpu.memory_space<vmem>>, %arg11: memref<1x1x1xf32, #tpu.memory_space<vmem>>) attributes {dimension_semantics = [#tpu.dimension_semantics<parallel>], iteration_bounds = array<i64: 1>, scalar_prefetch = 0 : i64, scratch_operands = 0 : i64, tpu.core_type = #tpu.core_type<tc>, window_params = [{transform_indices = @transform_0, window_bounds = array<i64: 32, 128>}, {pipeline_mode = #tpu.pipeline_mode<synchronous>, transform_indices = @transform_1, window_bounds = array<i64: 32, 32>}, {pipeline_mode = #tpu.pipeline_mode<synchronous>, transform_indices = @transform_2, window_bounds = array<i64: 32, 1>}, {pipeline_mode = #tpu.pipeline_mode<synchronous>, transform_indices = @transform_3, window_bounds = array<i64: 128, 32>}, {pipeline_mode = #tpu.pipeline_mode<synchronous>, transform_indices = @transform_4, window_bounds = array<i64: 128, 1>}, {pipeline_mode = #tpu.pipeline_mode<synchronous>, transform_indices = @transform_5, window_bounds = array<i64: 32, 128>}, {pipeline_mode = #tpu.pipeline_mode<synchronous>, transform_indices = @transform_6, window_bounds = array<i64: 32, 128>}, {transform_indices = @transform_7, window_bounds = array<i64: 32, 128>}, {transform_indices = @transform_8, window_bounds = array<i64: 1, 128>}, {transform_indices = @transform_9, window_bounds = array<i64: 1, 128, 1>}, {transform_indices = @transform_10, window_bounds = array<i64: 1, 1, 1>}]} {
    %c0 = arith.constant 0 : index
    %c0_0 = arith.constant 0 : index
    %0 = vector.load %arg1[%c0, %c0_0] : memref<32x128xf32, #tpu.memory_space<vmem>>, vector<32x128xf32>
    %1 = arith.truncf %0 : vector<32x128xf32> to vector<32x128xbf16>
    %c0_1 = arith.constant 0 : index
    %c0_2 = arith.constant 0 : index
    %2 = vector.load %arg2[%c0_1, %c0_2] : memref<32x32xbf16, #tpu.memory_space<vmem>>, vector<32x32xbf16>
    %cst = arith.constant dense<0.000000e+00> : vector<32x128xf32>
    %3 = tpu.matmul %2, %1, %cst {dimension_numbers = #tpu.dot_dimension_numbers<[1], [0], [0], [1], [0, 0, 1, 1], [], []>} : vector<32x32xbf16>, vector<32x128xbf16>, vector<32x128xf32> -> vector<32x128xf32>
    %c0_3 = arith.constant 0 : index
    %c0_4 = arith.constant 0 : index
    %4 = vector.load %arg3[%c0_3, %c0_4] : memref<32x1xf32, #tpu.memory_space<vmem>>, vector<32x1xf32>
    %5 = vector.broadcast %4 : vector<32x1xf32> to vector<32x128xf32>
    %6 = arith.addf %3, %5 : vector<32x128xf32>
    %7 = arith.negf %6 : vector<32x128xf32>
    %8 = math.exp %7 : vector<32x128xf32>
    %cst_5 = arith.constant 1.000000e+00 : f32
    %9 = vector.broadcast %cst_5 : f32 to vector<32x128xf32>
    %10 = arith.addf %9, %8 : vector<32x128xf32>
    %11 = arith.divf %9, %10 : vector<32x128xf32>
    %12 = arith.truncf %11 : vector<32x128xf32> to vector<32x128xbf16>
    %c0_6 = arith.constant 0 : index
    %c0_7 = arith.constant 0 : index
    %13 = vector.load %arg4[%c0_6, %c0_7] : memref<128x32xbf16, #tpu.memory_space<vmem>>, vector<128x32xbf16>
    %cst_8 = arith.constant dense<0.000000e+00> : vector<128x128xf32>
    %14 = tpu.matmul %13, %12, %cst_8 {dimension_numbers = #tpu.dot_dimension_numbers<[1], [0], [0], [1], [0, 0, 1, 1], [], []>} : vector<128x32xbf16>, vector<32x128xbf16>, vector<128x128xf32> -> vector<128x128xf32>
    %c0_9 = arith.constant 0 : index
    %c0_10 = arith.constant 0 : index
    %15 = vector.load %arg5[%c0_9, %c0_10] : memref<128x1xf32, #tpu.memory_space<vmem>>, vector<128x1xf32>
    %16 = vector.broadcast %15 : vector<128x1xf32> to vector<128x128xf32>
    %17 = arith.addf %16, %14 : vector<128x128xf32>
    %18 = tpu.iota {dimensions = array<i32: 0>} : vector<128x128xi32>
    %19 = arith.sitofp %18 : vector<128x128xi32> to vector<128x128xf32>
    %cst_11 = arith.constant dense<0x7F800000> : vector<128xf32>
    %20 = vector.multi_reduction <minimumf>, %17, %cst_11 [0] : vector<128x128xf32> to vector<128xf32>
    %21 = vector.shape_cast %20 : vector<128xf32> to vector<1x128xf32>
    %22 = vector.broadcast %21 : vector<1x128xf32> to vector<128x128xf32>
    %23 = arith.cmpf ole, %17, %22 : vector<128x128xf32>
    %cst_12 = arith.constant 1.280000e+02 : f32
    %24 = vector.broadcast %cst_12 : f32 to vector<128x128xf32>
    %25 = arith.select %23, %19, %24 : vector<128x128xi1>, vector<128x128xf32>
    %cst_13 = arith.constant dense<0x7F800000> : vector<128xf32>
    %26 = vector.multi_reduction <minimumf>, %25, %cst_13 [0] : vector<128x128xf32> to vector<128xf32>
    %27 = vector.shape_cast %26 : vector<128xf32> to vector<1x128xf32>
    %28 = arith.fptosi %27 : vector<1x128xf32> to vector<1x128xi32>
    %c0_14 = arith.constant 0 : index
    %c0_15 = arith.constant 0 : index
    %29 = vector.load %arg9[%c0_14, %c0_15] : memref<1x128xi32, #tpu.memory_space<vmem>>, vector<1x128xi32>
    tpu.vector_store %arg9[%c0_14, %c0_15], %28 {strides = array<i32>} : memref<1x128xi32, #tpu.memory_space<vmem>>, vector<1x128xi32>,
    %30 = vector.broadcast %27 : vector<1x128xf32> to vector<128x128xf32>
    %31 = arith.cmpf oeq, %19, %30 : vector<128x128xf32>
    %32 = arith.extui %31 : vector<128x128xi1> to vector<128x128xi32>
    %33 = arith.sitofp %32 : vector<128x128xi32> to vector<128x128xf32>
    %34 = arith.truncf %33 : vector<128x128xf32> to vector<128x128xbf16>
    %c0_16 = arith.constant 0 : index
    %c0_17 = arith.constant 0 : index
    %35 = vector.load %arg6[%c0_16, %c0_17] : memref<32x128xbf16, #tpu.memory_space<vmem>>, vector<32x128xbf16>
    %cst_18 = arith.constant dense<0.000000e+00> : vector<32x128xf32>
    %36 = tpu.matmul %35, %34, %cst_18 {dimension_numbers = #tpu.dot_dimension_numbers<[1], [0], [0], [1], [0, 0, 1, 1], [], []>} : vector<32x128xbf16>, vector<128x128xbf16>, vector<32x128xf32> -> vector<32x128xf32>
    %c0_19 = arith.constant 0 : index
    %c0_20 = arith.constant 0 : index
    %37 = vector.load %arg7[%c0_19, %c0_20] : memref<32x128xbf16, #tpu.memory_space<vmem>>, vector<32x128xbf16>
    %cst_21 = arith.constant dense<0.000000e+00> : vector<32x128xf32>
    %38 = tpu.matmul %37, %34, %cst_21 {dimension_numbers = #tpu.dot_dimension_numbers<[1], [0], [0], [1], [0, 0, 1, 1], [], []>} : vector<32x128xbf16>, vector<128x128xbf16>, vector<32x128xf32> -> vector<32x128xf32>
    %39 = arith.addf %36, %38 : vector<32x128xf32>
    %c0_22 = arith.constant 0 : index
    %c0_23 = arith.constant 0 : index
    %40 = vector.load %arg8[%c0_22, %c0_23] : memref<32x128xf32, #tpu.memory_space<vmem>>, vector<32x128xf32>
    tpu.vector_store %arg8[%c0_22, %c0_23], %39 {strides = array<i32>} : memref<32x128xf32, #tpu.memory_space<vmem>>, vector<32x128xf32>,
    %c128_i32 = arith.constant 128 : i32
    %41 = arith.muli %arg0, %c128_i32 : i32
    %42 = tpu.iota {dimensions = array<i32: 1>} : vector<1x128xi32>
    %43 = vector.broadcast %41 : i32 to vector<1x128xi32>
    %44 = arith.addi %43, %42 : vector<1x128xi32>
    %c16_i32 = arith.constant 16 : i32
    %45 = vector.broadcast %c16_i32 : i32 to vector<1x128xi32>
    %46 = arith.cmpi slt, %44, %45 : vector<1x128xi32>
    %47 = arith.extui %46 : vector<1x128xi1> to vector<1x128xi32>
    %48 = arith.sitofp %47 : vector<1x128xi32> to vector<1x128xf32>
    %cst_24 = arith.constant 0.000000e+00 : f32
    %49 = vector.shape_cast %48 : vector<1x128xf32> to vector<1x128xf32>
    %50 = vector.broadcast %49 : vector<1x128xf32> to vector<128x128xf32>
    %51 = vector.broadcast %cst_24 : f32 to vector<128x128xf32>
    %52 = arith.select %31, %50, %51 : vector<128x128xi1>, vector<128x128xf32>
    %cst_25 = arith.constant dense<0.000000e+00> : vector<128xf32>
    %53 = vector.multi_reduction <add>, %52, %cst_25 [1] : vector<128x128xf32> to vector<128xf32>
    %54 = vector.shape_cast %53 : vector<128xf32> to vector<128x1xf32>
    %55 = vector.shape_cast %54 : vector<128x1xf32> to vector<1x128x1xf32>
    %c0_26 = arith.constant 0 : index
    %c0_27 = arith.constant 0 : index
    %c0_28 = arith.constant 0 : index
    %56 = vector.load %arg10[%c0_26, %c0_27, %c0_28] : memref<1x128x1xf32, #tpu.memory_space<vmem>>, vector<1x128x1xf32>
    tpu.vector_store %arg10[%c0_26, %c0_27, %c0_28], %55 {strides = array<i32>} : memref<1x128x1xf32, #tpu.memory_space<vmem>>, vector<1x128x1xf32>,
    %57 = arith.subf %39, %11 : vector<32x128xf32>
    %58 = arith.mulf %57, %57 : vector<32x128xf32>
    %cst_29 = arith.constant dense<0.000000e+00> : vector<128xf32>
    %59 = vector.multi_reduction <add>, %58, %cst_29 [0] : vector<32x128xf32> to vector<128xf32>
    %60 = vector.shape_cast %59 : vector<128xf32> to vector<1x128xf32>
    %61 = arith.mulf %60, %48 : vector<1x128xf32>
    %cst_30 = arith.constant dense<0.000000e+00> : vector<1xf32>
    %62 = vector.multi_reduction <add>, %61, %cst_30 [1] : vector<1x128xf32> to vector<1xf32>
    %63 = vector.shape_cast %62 : vector<1xf32> to vector<1x1xf32>
    %64 = vector.shape_cast %63 : vector<1x1xf32> to vector<1x1x1xf32>
    %c0_31 = arith.constant 0 : index
    %c0_32 = arith.constant 0 : index
    %c0_33 = arith.constant 0 : index
    %65 = vector.load %arg11[%c0_31, %c0_32, %c0_33] : memref<1x1x1xf32, #tpu.memory_space<vmem>>, vector<1x1x1xf32>
    tpu.vector_store %arg11[%c0_31, %c0_32, %c0_33], %64 {strides = array<i32>} : memref<1x1x1xf32, #tpu.memory_space<vmem>>, vector<1x1x1xf32>,
    return
  }
  func.func @transform_0(%arg0: i32) -> (i32, i32) {
    %c0_i32 = arith.constant 0 : i32
    %c0_i32_0 = arith.constant 0 : i32
    return %c0_i32, %arg0 : i32, i32
  }
  func.func @transform_1(%arg0: i32) -> (i32, i32) {
    %c0_i32 = arith.constant 0 : i32
    %c0_i32_0 = arith.constant 0 : i32
    %c0_i32_1 = arith.constant 0 : i32
    return %c0_i32, %c0_i32_0 : i32, i32
  }
  func.func @transform_2(%arg0: i32) -> (i32, i32) {
    %c0_i32 = arith.constant 0 : i32
    %c0_i32_0 = arith.constant 0 : i32
    %c0_i32_1 = arith.constant 0 : i32
    return %c0_i32, %c0_i32_0 : i32, i32
  }
  func.func @transform_3(%arg0: i32) -> (i32, i32) {
    %c0_i32 = arith.constant 0 : i32
    %c0_i32_0 = arith.constant 0 : i32
    %c0_i32_1 = arith.constant 0 : i32
    return %c0_i32, %c0_i32_0 : i32, i32
  }
  func.func @transform_4(%arg0: i32) -> (i32, i32) {
    %c0_i32 = arith.constant 0 : i32
    %c0_i32_0 = arith.constant 0 : i32
    %c0_i32_1 = arith.constant 0 : i32
    return %c0_i32, %c0_i32_0 : i32, i32
  }
  func.func @transform_5(%arg0: i32) -> (i32, i32) {
    %c0_i32 = arith.constant 0 : i32
    %c0_i32_0 = arith.constant 0 : i32
    %c0_i32_1 = arith.constant 0 : i32
    return %c0_i32, %c0_i32_0 : i32, i32
  }
  func.func @transform_6(%arg0: i32) -> (i32, i32) {
    %c0_i32 = arith.constant 0 : i32
    %c0_i32_0 = arith.constant 0 : i32
    %c0_i32_1 = arith.constant 0 : i32
    return %c0_i32, %c0_i32_0 : i32, i32
  }
  func.func @transform_7(%arg0: i32) -> (i32, i32) {
    %c0_i32 = arith.constant 0 : i32
    %c0_i32_0 = arith.constant 0 : i32
    return %c0_i32, %arg0 : i32, i32
  }
  func.func @transform_8(%arg0: i32) -> (i32, i32) {
    %c0_i32 = arith.constant 0 : i32
    %c0_i32_0 = arith.constant 0 : i32
    return %c0_i32, %arg0 : i32, i32
  }
  func.func @transform_9(%arg0: i32) -> (i32, i32, i32) {
    %c0_i32 = arith.constant 0 : i32
    %c0_i32_0 = arith.constant 0 : i32
    %c0_i32_1 = arith.constant 0 : i32
    return %arg0, %c0_i32, %c0_i32_0 : i32, i32, i32
  }
  func.func @transform_10(%arg0: i32) -> (i32, i32, i32) {
    %c0_i32 = arith.constant 0 : i32
    %c0_i32_0 = arith.constant 0 : i32
    %c0_i32_1 = arith.constant 0 : i32
    return %arg0, %c0_i32, %c0_i32_0 : i32, i32, i32
  }
}

</mosaic_0001>

<llo_original>
// kernel: tpu_custom_call.1
$region0: #{tpu_custom_call.1}
  #allocation0 [shape = 'u32[]', space=smem, size = 0x4, offset = 0x4, fixed_abs, tag = 'smem constant byte address 0x4 - core index']
  #allocation1 [shape = 'u32[144,128]{1,0:T(1,128)}', space=vmem, size = 0x12000, scoped, tag = 'internal scratch']
  %s0 = inlined_call_operand.vmem [shape: f32[32,128], index: 0, kind: input, shape index: {}]
  %s1 = inlined_call_operand.vmem [shape: bf16[32,32], index: 1, kind: input, shape index: {}]
  %s2 = inlined_call_operand.vmem [shape: f32[32,1], index: 2, kind: input, shape index: {}]
  %s3 = inlined_call_operand.vmem [shape: bf16[128,32], index: 3, kind: input, shape index: {}]
  %s4 = inlined_call_operand.vmem [shape: f32[128,1], index: 4, kind: input, shape index: {}]
  %s5 = inlined_call_operand.vmem [shape: bf16[32,128], index: 5, kind: input, shape index: {}]
  %s6 = inlined_call_operand.vmem [shape: bf16[32,128], index: 6, kind: input, shape index: {}]
  %s7 = inlined_call_operand.hbm [shape: f32[32,128], index: 7, kind: output, shape index: {0}]
  %s8 = inlined_call_operand.hbm [shape: s32[1,128], index: 8, kind: output, shape index: {1}]
  %s9 = inlined_call_operand.vmem [shape: f32[1,128,1], index: 9, kind: output, shape index: {2}]
  %s10 = inlined_call_operand.hbm [shape: f32[1,1,1], index: 10, kind: output, shape index: {3}]
  %11 = xla_tuple %s7, %s8, %s9, %s10
  %s12 = sld [smem:[#allocation0]]
  $region62: #{tpu_custom_call.1} parent=0
    _
  %s14 = ssub.s32 1, %s12
  %s15 = scalar_select 0, %s14, %s12
  $region1: #{tpu_custom_call.1} parent=0
    #allocation2 [shape = 'u8[16384]{0}', space=vmem, size = 0x4000, scoped, tag = 'output window, operand 0, single buffered']
    #allocation3 [shape = 's32[1]{0}', space=sflag, size = 0x4, scoped, tag = 'scoped memory for tpu_custom_call.1']
    #allocation4 [shape = 'u8[512]{0}', space=vmem, size = 0x400, scoped, tag = 'output window, operand 1, single buffered']
    #allocation5 [shape = 's32[1]{0}', space=sflag, size = 0x4, scoped, tag = 'scoped memory for tpu_custom_call.1']
    #allocation6 [shape = 'u8[512]{0}', space=vmem, size = 0x400, scoped, tag = 'output window, operand 3, single buffered']
    %16 = vsyncpa [#allocation3], 0
    %17 = vsyncpa [#allocation5], 0
    // Predicated region
    $region2: #{tpu_custom_call.1} parent=1 // pred_check
      _
    $region3: #{tpu_custom_call.1} parent=1 // pred_check_branch
      %19 = sbr.rel (0) target = $region5
    $region4: #{tpu_custom_call.1} parent=1 // pred_region
      _
    $region5: #{tpu_custom_call.1} parent=1 // pred_fallthru
      _
    // Predicated region
    $region6: #{tpu_custom_call.1} parent=1 // pred_check
      _
    $region7: #{tpu_custom_call.1} parent=1 // pred_check_branch
      %21 = sbr.rel (0) target = $region9
    $region8: #{tpu_custom_call.1} parent=1 // pred_region
      _
    $region9: #{tpu_custom_call.1} parent=1 // pred_fallthru
      _
    // Predicated region
    $region10: #{tpu_custom_call.1} parent=1 // pred_check
      _
    $region11: #{tpu_custom_call.1} parent=1 // pred_check_branch
      %23 = sbr.rel (0) target = $region13
    $region12: #{tpu_custom_call.1} parent=1 // pred_region
      _
    $region13: #{tpu_custom_call.1} parent=1 // pred_fallthru
      _
    // Predicated region
    $region14: #{tpu_custom_call.1} parent=1 // pred_check
      _
    $region15: #{tpu_custom_call.1} parent=1 // pred_check_branch
      %25 = sbr.rel (0) target = $region17
    $region16: #{tpu_custom_call.1} parent=1 // pred_region
      _
    $region17: #{tpu_custom_call.1} parent=1 // pred_fallthru
      _
    // Predicated region
    $region18: #{tpu_custom_call.1} parent=1 // pred_check
      _
    $region19: #{tpu_custom_call.1} parent=1 // pred_check_branch
      %27 = sbr.rel (0) target = $region21
    $region20: #{tpu_custom_call.1} parent=1 // pred_region
      _
    $region21: #{tpu_custom_call.1} parent=1 // pred_fallthru
      _
    // Predicated region
    $region22: #{tpu_custom_call.1} parent=1 // pred_check
      _
    $region23: #{tpu_custom_call.1} parent=1 // pred_check_branch
      %29 = sbr.rel (0) target = $region25
    $region24: #{tpu_custom_call.1} parent=1 // pred_region
      _
    $region25: #{tpu_custom_call.1} parent=1 // pred_fallthru
      _
    // Predicated region
    $region26: #{tpu_custom_call.1} parent=1 // pred_check
      _
    $region27: #{tpu_custom_call.1} parent=1 // pred_check_branch
      %31 = sbr.rel (0) target = $region29
    $region28: #{tpu_custom_call.1} parent=1 // pred_region
      _
    $region29: #{tpu_custom_call.1} parent=1 // pred_fallthru
      _
    %v33 = vld [vmem:[%s0] sm:$0xff]
    %v34 = vld [vmem:[%s0 + $0x8] sm:$0xff]
    %v35 = vld [vmem:[%s0 + $0x10] sm:$0xff]
    %v36 = vld [vmem:[%s0 + $0x18] sm:$0xff]
    %v37 = vpack.c.bf16 %v34, %v33
    %v38 = vpack.c.bf16 %v36, %v35
    %v39 = vld [vmem:[%s1] sm:$0xf]
    %v40 = vld [vmem:[%s1 + $0x4] sm:$0xf]
    %v41 = vld [vmem:[%s1 + $0x8] sm:$0xf]
    %v42 = vld [vmem:[%s1 + $0xc] sm:$0xf]
    %v43 = vld [vmem:[%s2] sm:$0xff]
    %v44 = vld [vmem:[%s2 + $0x8] sm:$0xff]
    %v45 = vld [vmem:[%s2 + $0x10] sm:$0xff]
    %v46 = vld [vmem:[%s2 + $0x18] sm:$0xff]
    %48 = vset.pattern.permute.xlu0 0
    %49 = vperm.xlu0 %48, %v43
    %v50 = vpop.permute.xlu0 %49
    %53 = vset.pattern.permute.xlu0 0
    %54 = vperm.xlu0 %53, %v44
    %v55 = vpop.permute.xlu0 %54
    %58 = vset.pattern.permute.xlu0 0
    %59 = vperm.xlu0 %58, %v45
    %v60 = vpop.permute.xlu0 %59
    %63 = vset.pattern.permute.xlu0 0
    %64 = vperm.xlu0 %63, %v46
    %v65 = vpop.permute.xlu0 %64
    %v71 = vunpack.c.l.b16 %v39
    %v72 = vunpack.c.l.b16 %v40
    %v73 = vunpack.c.l.b16 %v41
    %v74 = vunpack.c.l.b16 %v42
    %v75 = vpack.c.b16 %v72, %v71
    %v76 = vpack.c.b16 %v74, %v73
    %vm77 = vcmask 261120
    %v79 = vsel %vm77, %v75, 0
    %v82 = vsel %vm77, %v76, 0
    %84 = vmatprep.subr.bf16.mxu0 0
    %85 = vmatpush1.bf16.msra.mxu0 %v37
    %86 = vmatprep.subr.bf16.mxu0 0
    %87 = vmatpush1.bf16.msra.mxu0 %v38
    %88 = vmatprep.subr.bf16.mxu0 0
    %89 = vmatpush1.bf16.msra.mxu0 0
    %90 = vmatprep.subr.bf16.mxu0 0
    %91 = vmatpush1.bf16.msra.mxu0 0
    %92 = vmatprep.subr.bf16.mxu0 0
    %93 = vmatpush1.bf16.msra.mxu0 0
    %94 = vmatprep.subr.bf16.mxu0 0
    %95 = vmatpush1.bf16.msra.mxu0 0
    %96 = vmatprep.subr.bf16.mxu0 0
    %97 = vmatpush1.bf16.msra.mxu0 0
    %98 = vmatprep.subr.bf16.mxu0 0
    %99 = vmatpush1.bf16.msra.mxu0 0
    %100 = vmatprep.subr.bf16.mxu0 0
    %101 = vmatpush1.bf16.msra.mxu0 0
    %102 = vmatprep.subr.bf16.mxu0 0
    %103 = vmatpush1.bf16.msra.mxu0 0
    %104 = vmatprep.subr.bf16.mxu0 0
    %105 = vmatpush1.bf16.msra.mxu0 0
    %106 = vmatprep.subr.bf16.mxu0 0
    %107 = vmatpush1.bf16.msra.mxu0 0
    %108 = vmatprep.subr.bf16.mxu0 0
    %109 = vmatpush1.bf16.msra.mxu0 0
    %110 = vmatprep.subr.bf16.mxu0 0
    %111 = vmatpush1.bf16.msra.mxu0 0
    %112 = vmatprep.subr.bf16.mxu0 0
    %113 = vmatpush1.bf16.msra.mxu0 0
    %114 = vmatprep.subr.bf16.mxu0 0
    %115 = vmatpush1.bf16.msra.mxu0 0
    %116 = vmatprep.mubr.bf16.mxu0 0
    %117 = vmatmul.mubr.bf16.gmra.mrb[0].mxu0 %v79
    %v118 = vpop.f32.mrb[0].mxu0
    %v119 = vadd.f32 %v50, %v118
    %v120 = vpop.f32.mrb[0].mxu0
    %v121 = vpop.f32.mrb[0].mxu0
    %v122 = vadd.f32 %v55, %v121
    %v123 = vpop.f32.mrb[0].mxu0
    %124 = vmatprep.mubr.bf16.mxu0 0
    %125 = vmatmul.mubr.bf16.gmra.mrb[0].mxu0 %v82
    %v126 = vpop.f32.mrb[0].mxu0
    %v127 = vadd.f32 %v60, %v126
    %v128 = vpop.f32.mrb[0].mxu0
    %v129 = vpop.f32.mrb[0].mxu0
    %v130 = vadd.f32 %v65, %v129
    %v131 = vpop.f32.mrb[0].mxu0
    %132 = vdwg.mxu0
    %v133 = vxor.u32 %v119, 2147483648
    %v134 = vxor.u32 %v122, 2147483648
    %v135 = vxor.u32 %v127, 2147483648
    %v136 = vxor.u32 %v130, 2147483648
    %v137 = vmul.f32 %v133, 1.442695
    %v138 = vpow.pop %v137
    %v139 = vmul.f32 %v134, 1.442695
    %v140 = vpow.pop %v139
    %v141 = vmul.f32 %v135, 1.442695
    %v142 = vpow.pop %v141
    %v143 = vmul.f32 %v136, 1.442695
    %v144 = vpow.pop %v143
    %v145 = vadd.f32 %v138, 1.0
    %v146 = vadd.f32 %v140, 1.0
    %v147 = vadd.f32 %v142, 1.0
    %v148 = vadd.f32 %v144, 1.0
    %v149 = vrcp.pop %v145
    %v150 = vmul.f32 1.0, %v149
    %v151 = vrcp.pop %v146
    %v152 = vmul.f32 1.0, %v151
    %v153 = vrcp.pop %v147
    %v154 = vmul.f32 1.0, %v153
    %v155 = vrcp.pop %v148
    %v156 = vmul.f32 1.0, %v155
    %v157 = vpack.c.bf16 %v152, %v150
    %v158 = vpack.c.bf16 %v156, %v154
    %v159 = vld [vmem:[%s3] sm:$0xf]
    %v160 = vld [vmem:[%s3 + $0x4] sm:$0xf]
    %v161 = vld [vmem:[%s3 + $0x8] sm:$0xf]
    %v162 = vld [vmem:[%s3 + $0xc] sm:$0xf]
    %v163 = vld [vmem:[%s3 + $0x10] sm:$0xf]
    %v164 = vld [vmem:[%s3 + $0x14] sm:$0xf]
    %v165 = vld [vmem:[%s3 + $0x18] sm:$0xf]
    %v166 = vld [vmem:[%s3 + $0x1c] sm:$0xf]
    %v167 = vld [vmem:[%s3 + $0x20] sm:$0xf]
    %v168 = vld [vmem:[%s3 + $0x24] sm:$0xf]
    %v169 = vld [vmem:[%s3 + $0x28] sm:$0xf]
    %v170 = vld [vmem:[%s3 + $0x2c] sm:$0xf]
    %v171 = vld [vmem:[%s3 + $0x30] sm:$0xf]
    %v172 = vld [vmem:[%s3 + $0x34] sm:$0xf]
    %v173 = vld [vmem:[%s3 + $0x38] sm:$0xf]
    %v174 = vld [vmem:[%s3 + $0x3c] sm:$0xf]
    %v191 = vunpack.c.l.b16 %v159
    %v192 = vunpack.c.l.b16 %v160
    %v193 = vunpack.c.l.b16 %v161
    %v194 = vunpack.c.l.b16 %v162
    %v195 = vunpack.c.l.b16 %v163
    %v196 = vunpack.c.l.b16 %v164
    %v197 = vunpack.c.l.b16 %v165
    %v198 = vunpack.c.l.b16 %v166
    %v199 = vunpack.c.l.b16 %v167
    %v200 = vunpack.c.l.b16 %v168
    %v201 = vunpack.c.l.b16 %v169
    %v202 = vunpack.c.l.b16 %v170
    %v203 = vunpack.c.l.b16 %v171
    %v204 = vunpack.c.l.b16 %v172
    %v205 = vunpack.c.l.b16 %v173
    %v206 = vunpack.c.l.b16 %v174
    %v207 = vpack.c.b16 %v192, %v191
    %v208 = vpack.c.b16 %v194, %v193
    %v209 = vpack.c.b16 %v196, %v195
    %v210 = vpack.c.b16 %v198, %v197
    %v211 = vpack.c.b16 %v200, %v199
    %v212 = vpack.c.b16 %v202, %v201
    %v213 = vpack.c.b16 %v204, %v203
    %v214 = vpack.c.b16 %v206, %v205
    %v216 = vsel %vm77, %v207, 0
    %v219 = vsel %vm77, %v208, 0
    %v222 = vsel %vm77, %v209, 0
    %v225 = vsel %vm77, %v210, 0
    %v228 = vsel %vm77, %v211, 0
    %v231 = vsel %vm77, %v212, 0
    %v234 = vsel %vm77, %v213, 0
    %v237 = vsel %vm77, %v214, 0
    %239 = vmatprep.subr.bf16.mxu0 0
    %240 = vmatpush1.bf16.msra.mxu0 %v157
    %241 = vmatprep.subr.bf16.mxu0 0
    %242 = vmatpush1.bf16.msra.mxu0 %v158
    %243 = vmatprep.subr.bf16.mxu0 0
    %244 = vmatpush1.bf16.msra.mxu0 0
    %245 = vmatprep.subr.bf16.mxu0 0
    %246 = vmatpush1.bf16.msra.mxu0 0
    %247 = vmatprep.subr.bf16.mxu0 0
    %248 = vmatpush1.bf16.msra.mxu0 0
    %249 = vmatprep.subr.bf16.mxu0 0
    %250 = vmatpush1.bf16.msra.mxu0 0
    %251 = vmatprep.subr.bf16.mxu0 0
    %252 = vmatpush1.bf16.msra.mxu0 0
    %253 = vmatprep.subr.bf16.mxu0 0
    %254 = vmatpush1.bf16.msra.mxu0 0
    %255 = vmatprep.subr.bf16.mxu0 0
    %256 = vmatpush1.bf16.msra.mxu0 0
    %257 = vmatprep.subr.bf16.mxu0 0
    %258 = vmatpush1.bf16.msra.mxu0 0
    %259 = vmatprep.subr.bf16.mxu0 0
    %260 = vmatpush1.bf16.msra.mxu0 0
    %261 = vmatprep.subr.bf16.mxu0 0
    %262 = vmatpush1.bf16.msra.mxu0 0
    %263 = vmatprep.subr.bf16.mxu0 0
    %264 = vmatpush1.bf16.msra.mxu0 0
    %265 = vmatprep.subr.bf16.mxu0 0
    %266 = vmatpush1.bf16.msra.mxu0 0
    %267 = vmatprep.subr.bf16.mxu0 0
    %268 = vmatpush1.bf16.msra.mxu0 0
    %269 = vmatprep.subr.bf16.mxu0 0
    %270 = vmatpush1.bf16.msra.mxu0 0
    %271 = vmatprep.mubr.bf16.mxu0 0
    %272 = vmatmul.mubr.bf16.gmra.mrb[0].mxu0 %v216
    %v273 = vpop.f32.mrb[0].mxu0
    %v274 = vadd.f32 0.0, %v273
    %v275 = vpop.f32.mrb[0].mxu0
    %v276 = vpop.f32.mrb[0].mxu0
    %v277 = vadd.f32 0.0, %v276
    %v278 = vpop.f32.mrb[0].mxu0
    %279 = vmatprep.mubr.bf16.mxu0 0
    %280 = vmatmul.mubr.bf16.gmra.mrb[0].mxu0 %v219
    %v281 = vpop.f32.mrb[0].mxu0
    %v282 = vadd.f32 0.0, %v281
    %v283 = vpop.f32.mrb[0].mxu0
    %v284 = vpop.f32.mrb[0].mxu0
    %v285 = vadd.f32 0.0, %v284
    %v286 = vpop.f32.mrb[0].mxu0
    %287 = vmatprep.mubr.bf16.mxu0 0
    %288 = vmatmul.mubr.bf16.gmra.mrb[0].mxu0 %v222
    %v289 = vpop.f32.mrb[0].mxu0
    %v290 = vadd.f32 0.0, %v289
    %v291 = vpop.f32.mrb[0].mxu0
    %v292 = vpop.f32.mrb[0].mxu0
    %v293 = vadd.f32 0.0, %v292
    %v294 = vpop.f32.mrb[0].mxu0
    %295 = vmatprep.mubr.bf16.mxu0 0
    %296 = vmatmul.mubr.bf16.gmra.mrb[0].mxu0 %v225
    %v297 = vpop.f32.mrb[0].mxu0
    %v298 = vadd.f32 0.0, %v297
    %v299 = vpop.f32.mrb[0].mxu0
    %v300 = vpop.f32.mrb[0].mxu0
    %v301 = vadd.f32 0.0, %v300
    %v302 = vpop.f32.mrb[0].mxu0
    %303 = vmatprep.mubr.bf16.mxu0 0
    %304 = vmatmul.mubr.bf16.gmra.mrb[0].mxu0 %v228
    %v305 = vpop.f32.mrb[0].mxu0
    %v306 = vadd.f32 0.0, %v305
    %v307 = vpop.f32.mrb[0].mxu0
    %v308 = vpop.f32.mrb[0].mxu0
    %v309 = vadd.f32 0.0, %v308
    %v310 = vpop.f32.mrb[0].mxu0
    %311 = vmatprep.mubr.bf16.mxu0 0
    %312 = vmatmul.mubr.bf16.gmra.mrb[0].mxu0 %v231
    %v313 = vpop.f32.mrb[0].mxu0
    %v314 = vadd.f32 0.0, %v313
    %v315 = vpop.f32.mrb[0].mxu0
    %v316 = vpop.f32.mrb[0].mxu0
    %v317 = vadd.f32 0.0, %v316
    %v318 = vpop.f32.mrb[0].mxu0
    %319 = vmatprep.mubr.bf16.mxu0 0
    %320 = vmatmul.mubr.bf16.gmra.mrb[0].mxu0 %v234
    %v321 = vpop.f32.mrb[0].mxu0
    %v322 = vadd.f32 0.0, %v321
    %v323 = vpop.f32.mrb[0].mxu0
    %v324 = vpop.f32.mrb[0].mxu0
    %v325 = vadd.f32 0.0, %v324
    %v326 = vpop.f32.mrb[0].mxu0
    %327 = vmatprep.mubr.bf16.mxu0 0
    %328 = vmatmul.mubr.bf16.gmra.mrb[0].mxu0 %v237
    %v329 = vpop.f32.mrb[0].mxu0
    %v330 = vadd.f32 0.0, %v329
    %v331 = vpop.f32.mrb[0].mxu0
    %v332 = vpop.f32.mrb[0].mxu0
    %v333 = vadd.f32 0.0, %v332
    %v334 = vpop.f32.mrb[0].mxu0
    %335 = vdwg.mxu0
    %v336 = vld [vmem:[%s4] sm:$0xff]
    %v337 = vld [vmem:[%s4 + $0x8] sm:$0xff]
    %v338 = vld [vmem:[%s4 + $0x10] sm:$0xff]
    %v339 = vld [vmem:[%s4 + $0x18] sm:$0xff]
    %v340 = vld [vmem:[%s4 + $0x20] sm:$0xff]
    %v341 = vld [vmem:[%s4 + $0x28] sm:$0xff]
    %v342 = vld [vmem:[%s4 + $0x30] sm:$0xff]
    %v343 = vld [vmem:[%s4 + $0x38] sm:$0xff]
    %v344 = vld [vmem:[%s4 + $0x40] sm:$0xff]
    %v345 = vld [vmem:[%s4 + $0x48] sm:$0xff]
    %v346 = vld [vmem:[%s4 + $0x50] sm:$0xff]
    %v347 = vld [vmem:[%s4 + $0x58] sm:$0xff]
    %v348 = vld [vmem:[%s4 + $0x60] sm:$0xff]
    %v349 = vld [vmem:[%s4 + $0x68] sm:$0xff]
    %v350 = vld [vmem:[%s4 + $0x70] sm:$0xff]
    %v351 = vld [vmem:[%s4 + $0x78] sm:$0xff]
    %353 = vset.pattern.permute.xlu0 0
    %354 = vperm.xlu0 %353, %v336
    %v355 = vpop.permute.xlu0 %354
    %358 = vset.pattern.permute.xlu0 0
    %359 = vperm.xlu0 %358, %v337
    %v360 = vpop.permute.xlu0 %359
    %363 = vset.pattern.permute.xlu0 0
    %364 = vperm.xlu0 %363, %v338
    %v365 = vpop.permute.xlu0 %364
    %368 = vset.pattern.permute.xlu0 0
    %369 = vperm.xlu0 %368, %v339
    %v370 = vpop.permute.xlu0 %369
    %373 = vset.pattern.permute.xlu0 0
    %374 = vperm.xlu0 %373, %v340
    %v375 = vpop.permute.xlu0 %374
    %378 = vset.pattern.permute.xlu0 0
    %379 = vperm.xlu0 %378, %v341
    %v380 = vpop.permute.xlu0 %379
    %383 = vset.pattern.permute.xlu0 0
    %384 = vperm.xlu0 %383, %v342
    %v385 = vpop.permute.xlu0 %384
    %388 = vset.pattern.permute.xlu0 0
    %389 = vperm.xlu0 %388, %v343
    %v390 = vpop.permute.xlu0 %389
    %393 = vset.pattern.permute.xlu0 0
    %394 = vperm.xlu0 %393, %v344
    %v395 = vpop.permute.xlu0 %394
    %398 = vset.pattern.permute.xlu0 0
    %399 = vperm.xlu0 %398, %v345
    %v400 = vpop.permute.xlu0 %399
    %403 = vset.pattern.permute.xlu0 0
    %404 = vperm.xlu0 %403, %v346
    %v405 = vpop.permute.xlu0 %404
    %408 = vset.pattern.permute.xlu0 0
    %409 = vperm.xlu0 %408, %v347
    %v410 = vpop.permute.xlu0 %409
    %413 = vset.pattern.permute.xlu0 0
    %414 = vperm.xlu0 %413, %v348
    %v415 = vpop.permute.xlu0 %414
    %418 = vset.pattern.permute.xlu0 0
    %419 = vperm.xlu0 %418, %v349
    %v420 = vpop.permute.xlu0 %419
    %423 = vset.pattern.permute.xlu0 0
    %424 = vperm.xlu0 %423, %v350
    %v425 = vpop.permute.xlu0 %424
    %428 = vset.pattern.permute.xlu0 0
    %429 = vperm.xlu0 %428, %v351
    %v430 = vpop.permute.xlu0 %429
    %v432 = vadd.f32 %v355, %v274
    %v433 = vadd.f32 %v360, %v277
    %v434 = vadd.f32 %v365, %v282
    %v435 = vadd.f32 %v370, %v285
    %v436 = vadd.f32 %v375, %v290
    %v437 = vadd.f32 %v380, %v293
    %v438 = vadd.f32 %v385, %v298
    %v439 = vadd.f32 %v390, %v301
    %v440 = vadd.f32 %v395, %v306
    %v441 = vadd.f32 %v400, %v309
    %v442 = vadd.f32 %v405, %v314
    %v443 = vadd.f32 %v410, %v317
    %v444 = vadd.f32 %v415, %v322
    %v445 = vadd.f32 %v420, %v325
    %v446 = vadd.f32 %v425, %v330
    %v447 = vadd.f32 %v430, %v333
    %v448 = vlaneseq
    %v449 = vshrl.u32 %v448, 7
    %v450 = vadd.s32 %v449, 8
    %v451 = vadd.s32 %v449, 16
    %v452 = vadd.s32 %v449, 24
    %v453 = vadd.s32 %v449, 32
    %v454 = vadd.s32 %v449, 40
    %v455 = vadd.s32 %v449, 48
    %v456 = vadd.s32 %v449, 56
    %v457 = vadd.s32 %v449, 64
    %v458 = vadd.s32 %v449, 72
    %v459 = vadd.s32 %v449, 80
    %v460 = vadd.s32 %v449, 88
    %v461 = vadd.s32 %v449, 96
    %v462 = vadd.s32 %v449, 104
    %v463 = vadd.s32 %v449, 112
    %v464 = vadd.s32 %v449, 120
    %v465 = vcvt.s32.f32 %v449
    %v466 = vcvt.s32.f32 %v450
    %v467 = vcvt.s32.f32 %v451
    %v468 = vcvt.s32.f32 %v452
    %v469 = vcvt.s32.f32 %v453
    %v470 = vcvt.s32.f32 %v454
    %v471 = vcvt.s32.f32 %v455
    %v472 = vcvt.s32.f32 %v456
    %v473 = vcvt.s32.f32 %v457
    %v474 = vcvt.s32.f32 %v458
    %v475 = vcvt.s32.f32 %v459
    %v476 = vcvt.s32.f32 %v460
    %v477 = vcvt.s32.f32 %v461
    %v478 = vcvt.s32.f32 %v462
    %v479 = vcvt.s32.f32 %v463
    %v480 = vcvt.s32.f32 %v464
    %v481 = vmin.f32 %v432, %v436
    %v482 = vmin.f32 %v433, %v437
    %v483 = vmin.f32 %v434, %v438
    %v484 = vmin.f32 %v435, %v439
    %v485 = vmin.f32 %v481, %v440
    %v486 = vmin.f32 %v482, %v441
    %v487 = vmin.f32 %v483, %v442
    %v488 = vmin.f32 %v484, %v443
    %v489 = vmin.f32 %v485, %v444
    %v490 = vmin.f32 %v486, %v445
    %v491 = vmin.f32 %v487, %v446
    %v492 = vmin.f32 %v488, %v447
    %v493 = vmin.f32 %v489, %v490
    %v494 = vmin.f32 %v491, %v492
    %v495 = vmin.f32 %v493, %v494
    %v496 = vrot.slane %v495, 4
    %v497 = vmin.f32 %v495, %v496
    %v498 = vrot.slane %v497, 2
    %v499 = vmin.f32 %v497, %v498
    %v500 = vrot.slane %v499, 1
    %v501 = vmin.f32 %v499, %v500
    %vm502 = vcmp.le.f32.partialorder %v432, %v501
    %vm503 = vcmp.le.f32.partialorder %v433, %v501
    %vm504 = vcmp.le.f32.partialorder %v434, %v501
    %vm505 = vcmp.le.f32.partialorder %v435, %v501
    %vm506 = vcmp.le.f32.partialorder %v436, %v501
    %vm507 = vcmp.le.f32.partialorder %v437, %v501
    %vm508 = vcmp.le.f32.partialorder %v438, %v501
    %vm509 = vcmp.le.f32.partialorder %v439, %v501
    %vm510 = vcmp.le.f32.partialorder %v440, %v501
    %vm511 = vcmp.le.f32.partialorder %v441, %v501
    %vm512 = vcmp.le.f32.partialorder %v442, %v501
    %vm513 = vcmp.le.f32.partialorder %v443, %v501
    %vm514 = vcmp.le.f32.partialorder %v444, %v501
    %vm515 = vcmp.le.f32.partialorder %v445, %v501
    %vm516 = vcmp.le.f32.partialorder %v446, %v501
    %vm517 = vcmp.le.f32.partialorder %v447, %v501
    %v518 = vsel %vm502, %v465, 128.0
    %v519 = vsel %vm503, %v466, 128.0
    %v520 = vsel %vm504, %v467, 128.0
    %v521 = vsel %vm505, %v468, 128.0
    %v522 = vsel %vm506, %v469, 128.0
    %v523 = vsel %vm507, %v470, 128.0
    %v524 = vsel %vm508, %v471, 128.0
    %v525 = vsel %vm509, %v472, 128.0
    %v526 = vsel %vm510, %v473, 128.0
    %v527 = vsel %vm511, %v474, 128.0
    %v528 = vsel %vm512, %v475, 128.0
    %v529 = vsel %vm513, %v476, 128.0
    %v530 = vsel %vm514, %v477, 128.0
    %v531 = vsel %vm515, %v478, 128.0
    %v532 = vsel %vm516, %v479, 128.0
    %v533 = vsel %vm517, %v480, 128.0
    %v534 = vmin.f32 %v518, %v522
    %v535 = vmin.f32 %v519, %v523
    %v536 = vmin.f32 %v520, %v524
    %v537 = vmin.f32 %v521, %v525
    %v538 = vmin.f32 %v534, %v526
    %v539 = vmin.f32 %v535, %v527
    %v540 = vmin.f32 %v536, %v528
    %v541 = vmin.f32 %v537, %v529
    %v542 = vmin.f32 %v538, %v530
    %v543 = vmin.f32 %v539, %v531
    %v544 = vmin.f32 %v540, %v532
    %v545 = vmin.f32 %v541, %v533
    %v546 = vmin.f32 %v542, %v543
    %v547 = vmin.f32 %v544, %v545
    %v548 = vmin.f32 %v546, %v547
    %v549 = vrot.slane %v548, 4
    %v550 = vmin.f32 %v548, %v549
    %v551 = vrot.slane %v550, 2
    %v552 = vmin.f32 %v550, %v551
    %v553 = vrot.slane %v552, 1
    %v554 = vmin.f32 %v552, %v553
    %v555 = vcvt.f32.s32.to.zero.pseudo %v554
    %556 = vst [vmem:[#allocation4] sm:$0x1] %v555
    %vm557 = vcmp.eq.f32.partialorder %v465, %v554
    %vm558 = vcmp.eq.f32.partialorder %v466, %v554
    %vm559 = vcmp.eq.f32.partialorder %v467, %v554
    %vm560 = vcmp.eq.f32.partialorder %v468, %v554
    %vm561 = vcmp.eq.f32.partialorder %v469, %v554
    %vm562 = vcmp.eq.f32.partialorder %v470, %v554
    %vm563 = vcmp.eq.f32.partialorder %v471, %v554
    %vm564 = vcmp.eq.f32.partialorder %v472, %v554
    %vm565 = vcmp.eq.f32.partialorder %v473, %v554
    %vm566 = vcmp.eq.f32.partialorder %v474, %v554
    %vm567 = vcmp.eq.f32.partialorder %v475, %v554
    %vm568 = vcmp.eq.f32.partialorder %v476, %v554
    %vm569 = vcmp.eq.f32.partialorder %v477, %v554
    %vm570 = vcmp.eq.f32.partialorder %v478, %v554
    %vm571 = vcmp.eq.f32.partialorder %v479, %v554
    %vm572 = vcmp.eq.f32.partialorder %v480, %v554
    %v573 = vsel %vm557, 1, 0
    %v574 = vsel %vm558, 1, 0
    %v575 = vsel %vm559, 1, 0
    %v576 = vsel %vm560, 1, 0
    %v577 = vsel %vm561, 1, 0
    %v578 = vsel %vm562, 1, 0
    %v579 = vsel %vm563, 1, 0
    %v580 = vsel %vm564, 1, 0
    %v581 = vsel %vm565, 1, 0
    %v582 = vsel %vm566, 1, 0
    %v583 = vsel %vm567, 1, 0
    %v584 = vsel %vm568, 1, 0
    %v585 = vsel %vm569, 1, 0
    %v586 = vsel %vm570, 1, 0
    %v587 = vsel %vm571, 1, 0
    %v588 = vsel %vm572, 1, 0
    %v589 = vcvt.s32.f32 %v573
    %v590 = vcvt.s32.f32 %v574
    %v591 = vcvt.s32.f32 %v575
    %v592 = vcvt.s32.f32 %v576
    %v593 = vcvt.s32.f32 %v577
    %v594 = vcvt.s32.f32 %v578
    %v595 = vcvt.s32.f32 %v579
    %v596 = vcvt.s32.f32 %v580
    %v597 = vcvt.s32.f32 %v581
    %v598 = vcvt.s32.f32 %v582
    %v599 = vcvt.s32.f32 %v583
    %v600 = vcvt.s32.f32 %v584
    %v601 = vcvt.s32.f32 %v585
    %v602 = vcvt.s32.f32 %v586
    %v603 = vcvt.s32.f32 %v587
    %v604 = vcvt.s32.f32 %v588
    %v605 = vpack.c.bf16 %v590, %v589
    %v606 = vpack.c.bf16 %v592, %v591
    %v607 = vpack.c.bf16 %v594, %v593
    %v608 = vpack.c.bf16 %v596, %v595
    %v609 = vpack.c.bf16 %v598, %v597
    %v610 = vpack.c.bf16 %v600, %v599
    %v611 = vpack.c.bf16 %v602, %v601
    %v612 = vpack.c.bf16 %v604, %v603
    %v613 = vld [vmem:[%s5] sm:$0xf]
    %v614 = vld [vmem:[%s5 + $0x4] sm:$0xf]
    %v615 = vld [vmem:[%s5 + $0x8] sm:$0xf]
    %v616 = vld [vmem:[%s5 + $0xc] sm:$0xf]
    %v617 = vld [vmem:[%s6] sm:$0xf]
    %v618 = vld [vmem:[%s6 + $0x4] sm:$0xf]
    %v619 = vld [vmem:[%s6 + $0x8] sm:$0xf]
    %v620 = vld [vmem:[%s6 + $0xc] sm:$0xf]
    %v625 = vunpack.c.l.b16 %v617
    %v626 = vunpack.c.l.b16 %v618
    %v627 = vunpack.c.l.b16 %v619
    %v628 = vunpack.c.l.b16 %v620
    %v629 = vpack.c.b16 %v626, %v625
    %v630 = vpack.c.b16 %v628, %v627
    %633 = vmatprep.subr.bf16.mxu0 0
    %634 = vmatpush1.bf16.msra.mxu0 %v605
    %635 = vmatprep.subr.bf16.mxu0 0
    %636 = vmatpush1.bf16.msra.mxu0 %v606
    %637 = vmatprep.subr.bf16.mxu0 0
    %638 = vmatpush1.bf16.msra.mxu0 %v607
    %639 = vmatprep.subr.bf16.mxu0 0
    %640 = vmatpush1.bf16.msra.mxu0 %v608
    %641 = vmatprep.subr.bf16.mxu0 0
    %642 = vmatpush1.bf16.msra.mxu0 %v609
    %643 = vmatprep.subr.bf16.mxu0 0
    %644 = vmatpush1.bf16.msra.mxu0 %v610
    %645 = vmatprep.subr.bf16.mxu0 0
    %646 = vmatpush1.bf16.msra.mxu0 %v611
    %647 = vmatprep.subr.bf16.mxu0 0
    %648 = vmatpush1.bf16.msra.mxu0 %v612
    %649 = vmatprep.subr.bf16.mxu0 0
    %650 = vmatpush1.bf16.msra.mxu0 0
    %651 = vmatprep.subr.bf16.mxu0 0
    %652 = vmatpush1.bf16.msra.mxu0 0
    %653 = vmatprep.subr.bf16.mxu0 0
    %654 = vmatpush1.bf16.msra.mxu0 0
    %655 = vmatprep.subr.bf16.mxu0 0
    %656 = vmatpush1.bf16.msra.mxu0 0
    %657 = vmatprep.subr.bf16.mxu0 0
    %658 = vmatpush1.bf16.msra.mxu0 0
    %659 = vmatprep.subr.bf16.mxu0 0
    %660 = vmatpush1.bf16.msra.mxu0 0
    %661 = vmatprep.subr.bf16.mxu0 0
    %662 = vmatpush1.bf16.msra.mxu0 0
    %663 = vmatprep.subr.bf16.mxu0 0
    %664 = vmatpush1.bf16.msra.mxu0 0
    %665 = vmatprep.mubr.bf16.mxu0 0
    %666 = vmatmul.mubr.bf16.gmra.mrb[0].mxu0 %v629
    %v667 = vpop.f32.mrb[0].mxu0
    %v668 = vadd.f32 0.0, %v667
    %v669 = vpop.f32.mrb[0].mxu0
    %v670 = vpop.f32.mrb[0].mxu0
    %v671 = vadd.f32 0.0, %v670
    %v672 = vpop.f32.mrb[0].mxu0
    %673 = vmatprep.mubr.bf16.mxu0 0
    %674 = vmatmul.mubr.bf16.gmra.mrb[0].mxu0 %v630
    %v675 = vpop.f32.mrb[0].mxu0
    %v676 = vadd.f32 0.0, %v675
    %v677 = vpop.f32.mrb[0].mxu0
    %v678 = vpop.f32.mrb[0].mxu0
    %v679 = vadd.f32 0.0, %v678
    %v680 = vpop.f32.mrb[0].mxu0
    %681 = vdwg.mxu0
    %v686 = vunpack.c.l.b16 %v613
    %v687 = vunpack.c.l.b16 %v614
    %v688 = vunpack.c.l.b16 %v615
    %v689 = vunpack.c.l.b16 %v616
    %v690 = vpack.c.b16 %v687, %v686
    %v691 = vpack.c.b16 %v689, %v688
    %694 = vmatprep.subr.bf16.mxu0 0
    %695 = vmatpush1.bf16.msra.mxu0 %v605
    %696 = vmatprep.subr.bf16.mxu0 0
    %697 = vmatpush1.bf16.msra.mxu0 %v606
    %698 = vmatprep.subr.bf16.mxu0 0
    %699 = vmatpush1.bf16.msra.mxu0 %v607
    %700 = vmatprep.subr.bf16.mxu0 0
    %701 = vmatpush1.bf16.msra.mxu0 %v608
    %702 = vmatprep.subr.bf16.mxu0 0
    %703 = vmatpush1.bf16.msra.mxu0 %v609
    %704 = vmatprep.subr.bf16.mxu0 0
    %705 = vmatpush1.bf16.msra.mxu0 %v610
    %706 = vmatprep.subr.bf16.mxu0 0
    %707 = vmatpush1.bf16.msra.mxu0 %v611
    %708 = vmatprep.subr.bf16.mxu0 0
    %709 = vmatpush1.bf16.msra.mxu0 %v612
    %710 = vmatprep.subr.bf16.mxu0 0
    %711 = vmatpush1.bf16.msra.mxu0 0
    %712 = vmatprep.subr.bf16.mxu0 0
    %713 = vmatpush1.bf16.msra.mxu0 0
    %714 = vmatprep.subr.bf16.mxu0 0
    %715 = vmatpush1.bf16.msra.mxu0 0
    %716 = vmatprep.subr.bf16.mxu0 0
    %717 = vmatpush1.bf16.msra.mxu0 0
    %718 = vmatprep.subr.bf16.mxu0 0
    %719 = vmatpush1.bf16.msra.mxu0 0
    %720 = vmatprep.subr.bf16.mxu0 0
    %721 = vmatpush1.bf16.msra.mxu0 0
    %722 = vmatprep.subr.bf16.mxu0 0
    %723 = vmatpush1.bf16.msra.mxu0 0
    %724 = vmatprep.subr.bf16.mxu0 0
    %725 = vmatpush1.bf16.msra.mxu0 0
    %726 = vmatprep.mubr.bf16.mxu0 0
    %727 = vmatmul.mubr.bf16.gmra.mrb[0].mxu0 %v690
    %v728 = vpop.f32.mrb[0].mxu0
    %v729 = vadd.f32 %v668, %v728
    %v730 = vpop.f32.mrb[0].mxu0
    %v731 = vpop.f32.mrb[0].mxu0
    %v732 = vadd.f32 %v671, %v731
    %v733 = vpop.f32.mrb[0].mxu0
    %734 = vmatprep.mubr.bf16.mxu0 0
    %735 = vmatmul.mubr.bf16.gmra.mrb[0].mxu0 %v691
    %v736 = vpop.f32.mrb[0].mxu0
    %v737 = vadd.f32 %v676, %v736
    %v738 = vpop.f32.mrb[0].mxu0
    %v739 = vpop.f32.mrb[0].mxu0
    %v740 = vadd.f32 %v679, %v739
    %v741 = vpop.f32.mrb[0].mxu0
    %742 = vdwg.mxu0
    %743 = vst [vmem:[#allocation2] sm:$0xff] %v729
    %744 = vst [vmem:[#allocation2 + $0x8] sm:$0xff] %v732
    %745 = vst [vmem:[#allocation2 + $0x10] sm:$0xff] %v737
    %746 = vst [vmem:[#allocation2 + $0x18] sm:$0xff] %v740
    %s747 = smul.u32 0, 128
    %v748 = vlaneseq
    %v749 = vand.u32 %v748, 127
    %v750 = vstv %s747
    %v751 = vadd.s32 %v750, %v749
    %vm752 = vcmp.lt.s32.totalorder %v751, 16
    %v753 = vsel %vm752, 1, 0
    %v754 = vcvt.s32.f32 %v753
    %v755 = vsel %vm557, %v754, 0.0
    %v756 = vsel %vm558, %v754, 0.0
    %v757 = vsel %vm559, %v754, 0.0
    %v758 = vsel %vm560, %v754, 0.0
    %v759 = vsel %vm561, %v754, 0.0
    %v760 = vsel %vm562, %v754, 0.0
    %v761 = vsel %vm563, %v754, 0.0
    %v762 = vsel %vm564, %v754, 0.0
    %v763 = vsel %vm565, %v754, 0.0
    %v764 = vsel %vm566, %v754, 0.0
    %v765 = vsel %vm567, %v754, 0.0
    %v766 = vsel %vm568, %v754, 0.0
    %v767 = vsel %vm569, %v754, 0.0
    %v768 = vsel %vm570, %v754, 0.0
    %v769 = vsel %vm571, %v754, 0.0
    %v770 = vsel %vm572, %v754, 0.0
    %771 = vadd.xlane.f32.xlu0 %v755
    %v772 = vpop.xlane.xlu0 %771
    %773 = vadd.xlane.f32.xlu0 %v756
    %v774 = vpop.xlane.xlu0 %773
    %775 = vadd.xlane.f32.xlu0 %v757
    %v776 = vpop.xlane.xlu0 %775
    %777 = vadd.xlane.f32.xlu0 %v758
    %v778 = vpop.xlane.xlu0 %777
    %779 = vadd.xlane.f32.xlu0 %v759
    %v780 = vpop.xlane.xlu0 %779
    %781 = vadd.xlane.f32.xlu0 %v760
    %v782 = vpop.xlane.xlu0 %781
    %783 = vadd.xlane.f32.xlu0 %v761
    %v784 = vpop.xlane.xlu0 %783
    %785 = vadd.xlane.f32.xlu0 %v762
    %v786 = vpop.xlane.xlu0 %785
    %787 = vadd.xlane.f32.xlu0 %v763
    %v788 = vpop.xlane.xlu0 %787
    %789 = vadd.xlane.f32.xlu0 %v764
    %v790 = vpop.xlane.xlu0 %789
    %791 = vadd.xlane.f32.xlu0 %v765
    %v792 = vpop.xlane.xlu0 %791
    %793 = vadd.xlane.f32.xlu0 %v766
    %v794 = vpop.xlane.xlu0 %793
    %795 = vadd.xlane.f32.xlu0 %v767
    %v796 = vpop.xlane.xlu0 %795
    %797 = vadd.xlane.f32.xlu0 %v768
    %v798 = vpop.xlane.xlu0 %797
    %799 = vadd.xlane.f32.xlu0 %v769
    %v800 = vpop.xlane.xlu0 %799
    %801 = vadd.xlane.f32.xlu0 %v770
    %v802 = vpop.xlane.xlu0 %801
    %vm803 = vcmask 7168
    %804 = vst.msk [vmem:[%s9] sm:$0xff] %vm803, %v772
    %805 = vst.msk [vmem:[%s9 + $0x8] sm:$0xff] %vm803, %v774
    %806 = vst.msk [vmem:[%s9 + $0x10] sm:$0xff] %vm803, %v776
    %807 = vst.msk [vmem:[%s9 + $0x18] sm:$0xff] %vm803, %v778
    %808 = vst.msk [vmem:[%s9 + $0x20] sm:$0xff] %vm803, %v780
    %809 = vst.msk [vmem:[%s9 + $0x28] sm:$0xff] %vm803, %v782
    %810 = vst.msk [vmem:[%s9 + $0x30] sm:$0xff] %vm803, %v784
    %811 = vst.msk [vmem:[%s9 + $0x38] sm:$0xff] %vm803, %v786
    %812 = vst.msk [vmem:[%s9 + $0x40] sm:$0xff] %vm803, %v788
    %813 = vst.msk [vmem:[%s9 + $0x48] sm:$0xff] %vm803, %v790
    %814 = vst.msk [vmem:[%s9 + $0x50] sm:$0xff] %vm803, %v792
    %815 = vst.msk [vmem:[%s9 + $0x58] sm:$0xff] %vm803, %v794
    %816 = vst.msk [vmem:[%s9 + $0x60] sm:$0xff] %vm803, %v796
    %817 = vst.msk [vmem:[%s9 + $0x68] sm:$0xff] %vm803, %v798
    %818 = vst.msk [vmem:[%s9 + $0x70] sm:$0xff] %vm803, %v800
    %819 = vst.msk [vmem:[%s9 + $0x78] sm:$0xff] %vm803, %v802
    %v820 = vsub.f32 %v729, %v150
    %v821 = vsub.f32 %v732, %v152
    %v822 = vsub.f32 %v737, %v154
    %v823 = vsub.f32 %v740, %v156
    %v824 = vmul.f32 %v820, %v820
    %v825 = vmul.f32 %v821, %v821
    %v826 = vmul.f32 %v822, %v822
    %v827 = vmul.f32 %v823, %v823
    %v828 = vadd.f32 %v824, %v825
    %v829 = vadd.f32 %v828, %v826
    %v830 = vadd.f32 %v829, %v827
    %v831 = vrot.slane %v830, 4
    %v832 = vadd.f32 %v830, %v831
    %v833 = vrot.slane %v832, 2
    %v834 = vadd.f32 %v832, %v833
    %v835 = vrot.slane %v834, 1
    %v836 = vadd.f32 %v834, %v835
    %v837 = vmul.f32 %v836, %v754
    %838 = vadd.xlane.f32.xlu0 %v837
    %v839 = vpop.xlane.xlu0 %838
    %vm840 = vcmask 0
    %841 = vst.msk [vmem:[#allocation6] sm:$0x1] %vm840, %v839
    // Predicated region
    $region30: #{tpu_custom_call.1} parent=1 // pred_check
      _
    $region31: #{tpu_custom_call.1} parent=1 // pred_check_branch
      %843 = sbr.rel (0) target = $region33
    $region32: #{tpu_custom_call.1} parent=1 // pred_region
      %s845 = ssub.s32 512, 512
      %846 = vsyncadd [#allocation3], %s845
      %s847 = sshll.u32 [#allocation2], 4
      %s848 = int_to_ptr.vmem [resolvable:$true] %s847
      %853 = dma.vmem_to_hbm [thread:$0]  %s848, 512, %s7, [#allocation3], 128, 128, 8
    $region33: #{tpu_custom_call.1} parent=1 // pred_fallthru
      _
    // Predicated region
    $region34: #{tpu_custom_call.1} parent=1 // pred_check
      _
    $region35: #{tpu_custom_call.1} parent=1 // pred_check_branch
      %855 = sbr.rel (0) target = $region37
    $region36: #{tpu_custom_call.1} parent=1 // pred_region
      %s857 = ssub.s32 16, 16
      %858 = vsyncadd [#allocation5], %s857
      %s860 = sshll.u32 [#allocation4], 4
      %s861 = int_to_ptr.vmem [resolvable:$true] %s860
      %863 = dma.vmem_to_hbm [thread:$0]  %s861, 16, %s8, [#allocation5]
    $region37: #{tpu_custom_call.1} parent=1 // pred_fallthru
      _
    // Predicated region
    $region38: #{tpu_custom_call.1} parent=1 // pred_check
      _
    $region39: #{tpu_custom_call.1} parent=1 // pred_check_branch
      %865 = sbr.rel (0) target = $region41
    $region40: #{tpu_custom_call.1} parent=1 // pred_region
      _
    $region41: #{tpu_custom_call.1} parent=1 // pred_fallthru
      _
    // Predicated region
    $region42: #{tpu_custom_call.1} parent=1 // pred_check
      _
    $region43: #{tpu_custom_call.1} parent=1 // pred_check_branch
      %867 = sbr.rel (0) target = $region45
    $region44: #{tpu_custom_call.1} parent=1 // pred_region
      %s869 = ssub.s32 16, 16
      %870 = vsyncadd [#allocation5], %s869
      %s872 = sshll.u32 [#allocation6], 4
      %s873 = int_to_ptr.vmem [resolvable:$true] %s872
      %875 = dma.vmem_to_hbm [thread:$0]  %s873, 16, %s10, [#allocation5]
    $region45: #{tpu_custom_call.1} parent=1 // pred_fallthru
      _
    // Predicated region
    $region46: #{tpu_custom_call.1} parent=1 // pred_check
      _
    $region47: #{tpu_custom_call.1} parent=1 // pred_check_branch
      %877 = sbr.rel (0) target = $region49
    $region48: #{tpu_custom_call.1} parent=1 // pred_region
      %878 = dma.done [#allocation3], 512
    $region49: #{tpu_custom_call.1} parent=1 // pred_fallthru
      _
    // Predicated region
    $region50: #{tpu_custom_call.1} parent=1 // pred_check
      _
    $region51: #{tpu_custom_call.1} parent=1 // pred_check_branch
      %880 = sbr.rel (0) target = $region53
    $region52: #{tpu_custom_call.1} parent=1 // pred_region
      %881 = dma.done [#allocation5], 16
    $region53: #{tpu_custom_call.1} parent=1 // pred_fallthru
      _
    // Predicated region
    $region54: #{tpu_custom_call.1} parent=1 // pred_check
      _
    $region55: #{tpu_custom_call.1} parent=1 // pred_check_branch
      %883 = sbr.rel (0) target = $region57
    $region56: #{tpu_custom_call.1} parent=1 // pred_region
      _
    $region57: #{tpu_custom_call.1} parent=1 // pred_fallthru
      _
    // Predicated region
    $region58: #{tpu_custom_call.1} parent=1 // pred_check
      _
    $region59: #{tpu_custom_call.1} parent=1 // pred_check_branch
      %885 = sbr.rel (0) target = $region61
    $region60: #{tpu_custom_call.1} parent=1 // pred_region
      %886 = dma.done [#allocation5], 16
    $region61: #{tpu_custom_call.1} parent=1 // pred_fallthru
      _
    %887 = vsyncpa [#allocation3], 1
    %888 = vsyncpa [#allocation5], 1

</llo_original>
